<compile_context>
chip_gen: v7x
topology: tpu7x:2x2x1
jax: 0.10.0
libtpu: 0.0.40
codegen_flags: <defaults>
</compile_context>

<pallas_src>
import jax
import jax.numpy as jnp
from jax.experimental import pallas as pl
from jax.experimental.pallas import tpu as pltpu


def _round_up(x, m):
    return ((x + m - 1) // m) * m


def film_kernel(cond_ref, w1_ref, w2_ref, w3_ref, b_ref, gamma_ref, beta_ref):
    """One batch tile of the fused FiLM MLP (all matmuls accumulate in f32)."""
    h1_w = w1_ref.shape[1]          # 256 (static)
    h2_w = w2_ref.shape[1]          # 256 (static)
    cp = gamma_ref.shape[1]         # chunk_pad, a multiple of 128 (static)

    x = cond_ref[...]
    # Layer 1: Linear(cond_dim -> 256) + ReLU
    h1 = jnp.dot(x, w1_ref[...], preferred_element_type=jnp.float32)
    h1 = jnp.maximum(h1 + b_ref[0:1, 0:h1_w], 0.0)
    # Layer 2: Linear(256 -> 256) + ReLU
    h2 = jnp.dot(h1, w2_ref[...], preferred_element_type=jnp.float32)
    h2 = jnp.maximum(h2 + b_ref[1:2, 0:h2_w], 0.0)
    # Layer 3: Linear(256 -> 2*chunk_pad); columns pre-arranged so gamma lives
    # in lanes [0:cp) and beta in lanes [cp:2cp).
    out = jnp.dot(h2, w3_ref[...], preferred_element_type=jnp.float32)
    out = out + b_ref[2:3, :]
    # Both slices are on 128-lane vreg boundaries -> lane-dense, unmasked vst.
    gamma_ref[...] = out[:, :cp].astype(gamma_ref.dtype)
    beta_ref[...] = out[:, cp:].astype(beta_ref.dtype)


def film_modulation(cond, kernel_params, hidden_dim, num_layers):
    """Fused FiLM MLP.  Returns (gamma, beta) as f32 (B, chunk) arrays."""
    w1, w2, w3p, bp = kernel_params
    B, cond_dim = cond.shape
    chunk = hidden_dim * (num_layers - 1)
    num_mod_params = 2 * chunk

    # Guards requested by review: packed layout must cover num_mod_params and
    # be 128-lane aligned.
    cp = w3p.shape[1] // 2
    assert cp % 128 == 0 and cp >= chunk, (cp, chunk)
    assert w3p.shape[1] >= num_mod_params
    assert bp.shape == (3, 2 * cp), bp.shape
    assert w1.shape == (cond_dim, w2.shape[0])

    # Sublane-aligned batch tile (>=8 rows f32); grid shards batch tiles across
    # TensorCores (v7x) while weight blocks stay VMEM-resident (constant index).
    Bp = _round_up(max(B, 1), 8)
    tb = min(128, Bp)
    Bp = _round_up(Bp, tb)
    cond_p = jnp.pad(cond, ((0, Bp - B), (0, 0))) if Bp != B else cond
    n_tiles = Bp // tb

    h1_w, h2_w = w1.shape[1], w2.shape[1]
    flops = 2 * Bp * (cond_dim * h1_w + h1_w * h2_w + h2_w * 2 * cp)
    bytes_accessed = (
        cond_p.size * cond_p.dtype.itemsize
        + sum(a.size * a.dtype.itemsize for a in (w1, w2, w3p, bp))
        + 2 * Bp * cp * 4
    )

    gamma_p, beta_p = pl.pallas_call(
        film_kernel,
        out_shape=(
            jax.ShapeDtypeStruct((Bp, cp), jnp.float32),
            jax.ShapeDtypeStruct((Bp, cp), jnp.float32),
        ),
        grid=(n_tiles,),
        in_specs=[
            pl.BlockSpec((tb, cond_dim), lambda i: (i, 0)),
            # Constant block index across the batch axis -> weights/biases are
            # fetched once and stay resident in VMEM for all batch tiles.
            pl.BlockSpec(w1.shape, lambda i: (0, 0)),
            pl.BlockSpec(w2.shape, lambda i: (0, 0)),
            pl.BlockSpec(w3p.shape, lambda i: (0, 0)),
            pl.BlockSpec(bp.shape, lambda i: (0, 0)),
        ],
        out_specs=(
            pl.BlockSpec((tb, cp), lambda i: (i, 0)),
            pl.BlockSpec((tb, cp), lambda i: (i, 0)),
        ),
        compiler_params=pltpu.CompilerParams(
            dimension_semantics=("parallel",)),
        cost_estimate=pl.CostEstimate(
            flops=flops, transcendentals=0, bytes_accessed=bytes_accessed),
    )(cond_p, w1, w2, w3p, bp)

    # Row-0 / lane-0 slices only (cheap), padding removed here.
    gamma = gamma_p[:B, :chunk]
    beta = beta_p[:B, :chunk]
    return gamma, beta


def init_params(key, cond_dim, hidden_dim, num_layers):
    """Deterministic synthetic init mirroring the PyTorch module layout:
    weights stored (in, out), biases 1-D, everything float32."""
    num_mod_params = 2 * hidden_dim * (num_layers - 1)
    ks = jax.random.split(key, 6)
    scale = 0.05
    w1 = scale * jax.random.normal(ks[0], (cond_dim, 256), jnp.float32)
    b1 = scale * jax.random.normal(ks[1], (256,), jnp.float32)
    w2 = scale * jax.random.normal(ks[2], (256, 256), jnp.float32)
    b2 = scale * jax.random.normal(ks[3], (256,), jnp.float32)
    w3 = scale * jax.random.normal(ks[4], (256, num_mod_params), jnp.float32)
    b3 = scale * jax.random.normal(ks[5], (num_mod_params,), jnp.float32)
    return (w1, b1, w2, b2, w3, b3)


def pack_params(params, hidden_dim, num_layers):
    """Repack module params for the kernel:
      * last layer's columns split into lane-dense gamma / beta halves, each
        zero-padded to chunk_pad = round_up(chunk, 128);
      * b1/b2/b3 packed into one (3, 2*chunk_pad) f32 array."""
    w1, b1, w2, b2, w3, b3 = params
    chunk = hidden_dim * (num_layers - 1)
    num_mod_params = 2 * chunk
    assert w3.shape[1] == num_mod_params and b3.shape[-1] == num_mod_params
    cp = _round_up(chunk, 128)
    W = 2 * cp  # >= 256 always (cp >= 128)

    w3p = jnp.zeros((w3.shape[0], W), jnp.float32)
    w3p = w3p.at[:, :chunk].set(w3[:, :chunk])          # gamma columns
    w3p = w3p.at[:, cp:cp + chunk].set(w3[:, chunk:])   # beta columns

    bp = jnp.zeros((3, W), jnp.float32)
    bp = bp.at[0, :b1.shape[0]].set(b1)
    bp = bp.at[1, :b2.shape[0]].set(b2)
    bp = bp.at[2, :chunk].set(b3[:chunk])
    bp = bp.at[2, cp:cp + chunk].set(b3[chunk:])
    return (w1, w2, w3p, bp)


def reference(cond, params):
    """Plain-JAX f32 reference of the original PyTorch module."""
    w1, b1, w2, b2, w3, b3 = params
    hi = jax.lax.Precision.HIGHEST
    h1 = jnp.maximum(jnp.dot(cond, w1, precision=hi) + b1, 0.0)
    h2 = jnp.maximum(jnp.dot(h1, w2, precision=hi) + b2, 0.0)
    out = jnp.dot(h2, w3, precision=hi) + b3
    chunk = out.shape[1] // 2
    return out[:, :chunk], out[:, chunk:]


if __name__ == "__main__":
    # Small shapes consistent with the module's forward.
    B = 2
    cond_dim = 32
    hidden_dim = 32
    num_layers = 4
    chunk = hidden_dim * (num_layers - 1)   # 96
    num_mod_params = 2 * chunk              # 192

    key = jax.random.PRNGKey(0)
    k_cond, k_params = jax.random.split(key)
    cond = jax.random.normal(k_cond, (B, cond_dim), jnp.float32)

    module_params = init_params(k_params, cond_dim, hidden_dim, num_layers)
    kernel_params = pack_params(module_params, hidden_dim, num_layers)

    gamma, beta = film_modulation(cond, kernel_params, hidden_dim, num_layers)
    gamma = jax.block_until_ready(gamma)
    beta = jax.block_until_ready(beta)

    # Correctness vs. the original-module f32 reference (tolerance covers
    # MXU f32-matmul rounding differences only).
    g_ref, b_ref = reference(cond, module_params)
    assert gamma.shape == (B, chunk)
    assert beta.shape == (B, chunk)
    assert jnp.allclose(gamma, g_ref, atol=5e-3, rtol=1e-2), (
        float(jnp.max(jnp.abs(gamma - g_ref))))
    assert jnp.allclose(beta, b_ref, atol=5e-3, rtol=1e-2), (
        float(jnp.max(jnp.abs(beta - b_ref))))

    print("KERNEL_OK")
</pallas_src>

<mosaic_0001>
module attributes {stable_mosaic.version = 11 : i64} {
  func.func @film_kernel(%arg0: i32, %arg1: memref<8x32xf32, #tpu.memory_space<vmem>>, %arg2: memref<32x256xf32, #tpu.memory_space<vmem>>, %arg3: memref<256x256xf32, #tpu.memory_space<vmem>>, %arg4: memref<256x256xf32, #tpu.memory_space<vmem>>, %arg5: memref<3x256xf32, #tpu.memory_space<vmem>>, %arg6: memref<8x128xf32, #tpu.memory_space<vmem>>, %arg7: memref<8x128xf32, #tpu.memory_space<vmem>>) attributes {dimension_semantics = [#tpu.dimension_semantics<parallel>], iteration_bounds = array<i64: 1>, scalar_prefetch = 0 : i64, scratch_operands = 0 : i64, tpu.core_type = #tpu.core_type<tc>, window_params = [{transform_indices = @transform_0, window_bounds = array<i64: 8, 32>}, {pipeline_mode = #tpu.pipeline_mode<synchronous>, transform_indices = @transform_1, window_bounds = array<i64: 32, 256>}, {pipeline_mode = #tpu.pipeline_mode<synchronous>, transform_indices = @transform_2, window_bounds = array<i64: 256, 256>}, {pipeline_mode = #tpu.pipeline_mode<synchronous>, transform_indices = @transform_3, window_bounds = array<i64: 256, 256>}, {pipeline_mode = #tpu.pipeline_mode<synchronous>, transform_indices = @transform_4, window_bounds = array<i64: 3, 256>}, {transform_indices = @transform_5, window_bounds = array<i64: 8, 128>}, {transform_indices = @transform_6, window_bounds = array<i64: 8, 128>}]} {
    %c0 = arith.constant 0 : index
    %c0_0 = arith.constant 0 : index
    %0 = vector.load %arg1[%c0, %c0_0] : memref<8x32xf32, #tpu.memory_space<vmem>>, vector<8x32xf32>
    %c0_1 = arith.constant 0 : index
    %c0_2 = arith.constant 0 : index
    %1 = vector.load %arg2[%c0_1, %c0_2] : memref<32x256xf32, #tpu.memory_space<vmem>>, vector<32x256xf32>
    %cst = arith.constant dense<0.000000e+00> : vector<8x256xf32>
    %2 = tpu.matmul %0, %1, %cst {dimension_numbers = #tpu.dot_dimension_numbers<[1], [0], [0], [1], [0, 0, 1, 1], [], []>} : vector<8x32xf32>, vector<32x256xf32>, vector<8x256xf32> -> vector<8x256xf32>
    %c0_3 = arith.constant 0 : index
    %c0_4 = arith.constant 0 : index
    %3 = vector.load %arg5[%c0_3, %c0_4] : memref<3x256xf32, #tpu.memory_space<vmem>>, vector<1x256xf32>
    %4 = vector.broadcast %3 : vector<1x256xf32> to vector<8x256xf32>
    %5 = arith.addf %2, %4 : vector<8x256xf32>
    %cst_5 = arith.constant 0.000000e+00 : f32
    %6 = vector.broadcast %cst_5 : f32 to vector<8x256xf32>
    %7 = arith.maximumf %5, %6 : vector<8x256xf32>
    %c0_6 = arith.constant 0 : index
    %c0_7 = arith.constant 0 : index
    %8 = vector.load %arg3[%c0_6, %c0_7] : memref<256x256xf32, #tpu.memory_space<vmem>>, vector<256x256xf32>
    %cst_8 = arith.constant dense<0.000000e+00> : vector<8x256xf32>
    %9 = tpu.matmul %7, %8, %cst_8 {dimension_numbers = #tpu.dot_dimension_numbers<[1], [0], [0], [1], [0, 0, 1, 1], [], []>} : vector<8x256xf32>, vector<256x256xf32>, vector<8x256xf32> -> vector<8x256xf32>
    %c1 = arith.constant 1 : index
    %c0_9 = arith.constant 0 : index
    %10 = vector.load %arg5[%c1, %c0_9] : memref<3x256xf32, #tpu.memory_space<vmem>>, vector<1x256xf32>
    %11 = vector.broadcast %10 : vector<1x256xf32> to vector<8x256xf32>
    %12 = arith.addf %9, %11 : vector<8x256xf32>
    %cst_10 = arith.constant 0.000000e+00 : f32
    %13 = vector.broadcast %cst_10 : f32 to vector<8x256xf32>
    %14 = arith.maximumf %12, %13 : vector<8x256xf32>
    %c0_11 = arith.constant 0 : index
    %c0_12 = arith.constant 0 : index
    %15 = vector.load %arg4[%c0_11, %c0_12] : memref<256x256xf32, #tpu.memory_space<vmem>>, vector<256x256xf32>
    %cst_13 = arith.constant dense<0.000000e+00> : vector<8x256xf32>
    %16 = tpu.matmul %14, %15, %cst_13 {dimension_numbers = #tpu.dot_dimension_numbers<[1], [0], [0], [1], [0, 0, 1, 1], [], []>} : vector<8x256xf32>, vector<256x256xf32>, vector<8x256xf32> -> vector<8x256xf32>
    %c2 = arith.constant 2 : index
    %c0_14 = arith.constant 0 : index
    %17 = vector.load %arg5[%c2, %c0_14] : memref<3x256xf32, #tpu.memory_space<vmem>>, vector<1x256xf32>
    %18 = vector.broadcast %17 : vector<1x256xf32> to vector<8x256xf32>
    %19 = arith.addf %16, %18 : vector<8x256xf32>
    %20 = vector.extract_strided_slice %19 {offsets = [0, 0], sizes = [8, 128], strides = [1, 1]} : vector<8x256xf32> to vector<8x128xf32>
    %c0_15 = arith.constant 0 : index
    %c0_16 = arith.constant 0 : index
    %21 = vector.load %arg6[%c0_15, %c0_16] : memref<8x128xf32, #tpu.memory_space<vmem>>, vector<8x128xf32>
    tpu.vector_store %arg6[%c0_15, %c0_16], %20 {strides = array<i32>} : memref<8x128xf32, #tpu.memory_space<vmem>>, vector<8x128xf32>,
    %22 = vector.extract_strided_slice %19 {offsets = [0, 128], sizes = [8, 128], strides = [1, 1]} : vector<8x256xf32> to vector<8x128xf32>
    %c0_17 = arith.constant 0 : index
    %c0_18 = arith.constant 0 : index
    %23 = vector.load %arg7[%c0_17, %c0_18] : memref<8x128xf32, #tpu.memory_space<vmem>>, vector<8x128xf32>
    tpu.vector_store %arg7[%c0_17, %c0_18], %22 {strides = array<i32>} : memref<8x128xf32, #tpu.memory_space<vmem>>, vector<8x128xf32>,
    return
  }
  func.func @transform_0(%arg0: i32) -> (i32, i32) {
    %c0_i32 = arith.constant 0 : i32
    %c0_i32_0 = arith.constant 0 : i32
    return %arg0, %c0_i32 : i32, i32
  }
  func.func @transform_1(%arg0: i32) -> (i32, i32) {
    %c0_i32 = arith.constant 0 : i32
    %c0_i32_0 = arith.constant 0 : i32
    %c0_i32_1 = arith.constant 0 : i32
    return %c0_i32, %c0_i32_0 : i32, i32
  }
  func.func @transform_2(%arg0: i32) -> (i32, i32) {
    %c0_i32 = arith.constant 0 : i32
    %c0_i32_0 = arith.constant 0 : i32
    %c0_i32_1 = arith.constant 0 : i32
    return %c0_i32, %c0_i32_0 : i32, i32
  }
  func.func @transform_3(%arg0: i32) -> (i32, i32) {
    %c0_i32 = arith.constant 0 : i32
    %c0_i32_0 = arith.constant 0 : i32
    %c0_i32_1 = arith.constant 0 : i32
    return %c0_i32, %c0_i32_0 : i32, i32
  }
  func.func @transform_4(%arg0: i32) -> (i32, i32) {
    %c0_i32 = arith.constant 0 : i32
    %c0_i32_0 = arith.constant 0 : i32
    %c0_i32_1 = arith.constant 0 : i32
    return %c0_i32, %c0_i32_0 : i32, i32
  }
  func.func @transform_5(%arg0: i32) -> (i32, i32) {
    %c0_i32 = arith.constant 0 : i32
    %c0_i32_0 = arith.constant 0 : i32
    return %arg0, %c0_i32 : i32, i32
  }
  func.func @transform_6(%arg0: i32) -> (i32, i32) {
    %c0_i32 = arith.constant 0 : i32
    %c0_i32_0 = arith.constant 0 : i32
    return %arg0, %c0_i32 : i32, i32
  }
}

</mosaic_0001>

<llo_original>
// kernel: tpu_custom_call.1
$region0: #{tpu_custom_call.1}
  #allocation0 [shape = 'u32[]', space=smem, size = 0x4, offset = 0x4, fixed_abs, tag = 'smem constant byte address 0x4 - core index']
  #allocation1 [shape = 'u32[144,128]{1,0:T(1,128)}', space=vmem, size = 0x12000, scoped, tag = 'internal scratch']
  %s0 = inlined_call_operand.hbm [shape: f32[8,32], index: 0, kind: input, shape index: {}]
  %s1 = inlined_call_operand.hbm [shape: f32[32,256], index: 1, kind: input, shape index: {}]
  %s2 = inlined_call_operand.hbm [shape: f32[256,256], index: 2, kind: input, shape index: {}]
  %s3 = inlined_call_operand.hbm [shape: f32[256,256], index: 3, kind: input, shape index: {}]
  %s4 = inlined_call_operand.vmem [shape: f32[3,256], index: 4, kind: input, shape index: {}]
  %s5 = inlined_call_operand.hbm [shape: f32[8,128], index: 5, kind: output, shape index: {0}]
  %s6 = inlined_call_operand.hbm [shape: f32[8,128], index: 6, kind: output, shape index: {1}]
  %7 = xla_tuple %s5, %s6
  %s8 = sld [smem:[#allocation0]]
  $region54: #{tpu_custom_call.1} parent=0
    _
  %s10 = ssub.s32 1, %s8
  %s11 = scalar_select 0, %s10, %s8
  $region1: #{tpu_custom_call.1} parent=0
    #allocation2 [shape = 'u8[4096]{0}', space=vmem, size = 0x1000, scoped, tag = 'input window, operand 0, single buffered']
    #allocation3 [shape = 's32[1]{0}', space=sflag, size = 0x4, scoped, tag = 'scoped memory for tpu_custom_call.1']
    #allocation4 [shape = 's32[1]{0}', space=sflag, size = 0x4, scoped, tag = 'scoped memory for tpu_custom_call.1']
    #allocation5 [shape = 'u8[32768]{0}', space=vmem, size = 0x8000, scoped, tag = 'input window, operand 1, single buffered']
    #allocation6 [shape = 's32[1]{0}', space=sflag, size = 0x4, scoped, tag = 'scoped memory for tpu_custom_call.1']
    #allocation7 [shape = 'u8[262144]{0}', space=vmem, size = 0x40000, scoped, tag = 'input window, operand 2, single buffered']
    #allocation8 [shape = 'u8[262144]{0}', space=vmem, size = 0x40000, scoped, tag = 'input window, operand 3, single buffered']
    #allocation9 [shape = 's32[1]{0}', space=sflag, size = 0x4, scoped, tag = 'scoped memory for tpu_custom_call.1']
    #allocation10 [shape = 'u8[4096]{0}', space=vmem, size = 0x1000, scoped, tag = 'output window, operand 0, single buffered']
    #allocation11 [shape = 'u8[4096]{0}', space=vmem, size = 0x1000, scoped, tag = 'output window, operand 1, single buffered']
    #allocation12 [shape = 's32[1]{0}', space=sflag, size = 0x4, scoped, tag = 'scoped memory for tpu_custom_call.1']
    %12 = vsyncpa [#allocation3], 0
    %13 = vsyncpa [#allocation6], 0
    %14 = vsyncpa [#allocation9], 0
    %15 = vsyncpa [#allocation4], 0
    %16 = vsyncpa [#allocation12], 0
    // Predicated region
    $region2: #{tpu_custom_call.1} parent=1 // pred_check
      _
    $region3: #{tpu_custom_call.1} parent=1 // pred_check_branch
      %18 = sbr.rel (0) target = $region5
    $region4: #{tpu_custom_call.1} parent=1 // pred_region
      %s20 = ssub.s32 128, 128
      %21 = vsyncadd [#allocation3], %s20
      %s23 = sshll.u32 [#allocation2], 4
      %s24 = int_to_ptr.vmem [resolvable:$true] %s23
      %26 = dma.hbm_to_vmem [thread:$0]  %s0, 128, %s24, [#allocation3]
    $region5: #{tpu_custom_call.1} parent=1 // pred_fallthru
      _
    // Predicated region
    $region6: #{tpu_custom_call.1} parent=1 // pred_check
      _
    $region7: #{tpu_custom_call.1} parent=1 // pred_check_branch
      %28 = sbr.rel (0) target = $region9
    $region8: #{tpu_custom_call.1} parent=1 // pred_region
      %s30 = ssub.s32 1024, 1024
      %31 = vsyncadd [#allocation6], %s30
      %s32 = sshll.u32 [#allocation5], 4
      %s33 = int_to_ptr.vmem [resolvable:$true] %s32
      %38 = dma.hbm_to_vmem [thread:$0]  %s1, 1024, %s33, [#allocation6], 256, 256, 16
    $region9: #{tpu_custom_call.1} parent=1 // pred_fallthru
      _
    // Predicated region
    $region10: #{tpu_custom_call.1} parent=1 // pred_check
      _
    $region11: #{tpu_custom_call.1} parent=1 // pred_check_branch
      %40 = sbr.rel (0) target = $region13
    $region12: #{tpu_custom_call.1} parent=1 // pred_region
      %s42 = ssub.s32 8192, 8192
      %43 = vsyncadd [#allocation6], %s42
      %s44 = sshll.u32 [#allocation7], 4
      %s45 = int_to_ptr.vmem [resolvable:$true] %s44
      %50 = dma.hbm_to_vmem [thread:$0]  %s2, 8192, %s45, [#allocation6], 256, 256, 16
    $region13: #{tpu_custom_call.1} parent=1 // pred_fallthru
      _
    // Predicated region
    $region14: #{tpu_custom_call.1} parent=1 // pred_check
      _
    $region15: #{tpu_custom_call.1} parent=1 // pred_check_branch
      %52 = sbr.rel (0) target = $region17
    $region16: #{tpu_custom_call.1} parent=1 // pred_region
      %s54 = ssub.s32 8192, 8192
      %55 = vsyncadd [#allocation9], %s54
      %s56 = sshll.u32 [#allocation8], 4
      %s57 = int_to_ptr.vmem [resolvable:$true] %s56
      %62 = dma.hbm_to_vmem [thread:$0]  %s3, 8192, %s57, [#allocation9], 256, 256, 16
    $region17: #{tpu_custom_call.1} parent=1 // pred_fallthru
      _
    // Predicated region
    $region18: #{tpu_custom_call.1} parent=1 // pred_check
      _
    $region19: #{tpu_custom_call.1} parent=1 // pred_check_branch
      %64 = sbr.rel (0) target = $region21
    $region20: #{tpu_custom_call.1} parent=1 // pred_region
      _
    $region21: #{tpu_custom_call.1} parent=1 // pred_fallthru
      _
    // Predicated region
    $region22: #{tpu_custom_call.1} parent=1 // pred_check
      _
    $region23: #{tpu_custom_call.1} parent=1 // pred_check_branch
      %66 = sbr.rel (0) target = $region25
    $region24: #{tpu_custom_call.1} parent=1 // pred_region
      %67 = dma.done [#allocation3], 128
    $region25: #{tpu_custom_call.1} parent=1 // pred_fallthru
      _
    // Predicated region
    $region26: #{tpu_custom_call.1} parent=1 // pred_check
      _
    $region27: #{tpu_custom_call.1} parent=1 // pred_check_branch
      %69 = sbr.rel (0) target = $region29
    $region28: #{tpu_custom_call.1} parent=1 // pred_region
      %70 = dma.done [#allocation6], 1024
    $region29: #{tpu_custom_call.1} parent=1 // pred_fallthru
      _
    // Predicated region
    $region30: #{tpu_custom_call.1} parent=1 // pred_check
      _
    $region31: #{tpu_custom_call.1} parent=1 // pred_check_branch
      %72 = sbr.rel (0) target = $region33
    $region32: #{tpu_custom_call.1} parent=1 // pred_region
      %73 = dma.done [#allocation6], 8192
    $region33: #{tpu_custom_call.1} parent=1 // pred_fallthru
      _
    // Predicated region
    $region34: #{tpu_custom_call.1} parent=1 // pred_check
      _
    $region35: #{tpu_custom_call.1} parent=1 // pred_check_branch
      %75 = sbr.rel (0) target = $region37
    $region36: #{tpu_custom_call.1} parent=1 // pred_region
      %76 = dma.done [#allocation9], 8192
    $region37: #{tpu_custom_call.1} parent=1 // pred_fallthru
      _
    %v77 = vld [vmem:[#allocation2] sm:$0xff]
    %v78 = vld [vmem:[#allocation5] sm:$0xff]
    %v79 = vld [vmem:[#allocation5 + $0x8] sm:$0xff]
    %v80 = vld [vmem:[#allocation5 + $0x10] sm:$0xff]
    %v81 = vld [vmem:[#allocation5 + $0x18] sm:$0xff]
    %v82 = vld [vmem:[#allocation5 + $0x20] sm:$0xff]
    %v83 = vld [vmem:[#allocation5 + $0x28] sm:$0xff]
    %v84 = vld [vmem:[#allocation5 + $0x30] sm:$0xff]
    %v85 = vld [vmem:[#allocation5 + $0x38] sm:$0xff]
    %v86 = vld [vmem:[%s4] ss:$4 sm:$0x3]
    %v88 = vlaneseq
    %v89 = vshrl.u32 %v88, 7
    %v90 = vsub.s32 0, %v89
    %v91 = vrot.slane %v86, %v90
    %v92 = vlaneseq
    %v93 = vshrl.u32 %v92, 7
    %v94 = vsub.s32 1, %v93
    %v95 = vrot.slane %v86, %v94
    %vm98 = vcmask 261120
    %v100 = vsel %vm98, %v77, 0
    %102 = vmatprep.subr.mxu0 %v79
    %103 = vmatpush1.msra.mxu0 %v78
    %104 = vmatprep.subr.mxu0 %v81
    %105 = vmatpush1.msra.mxu0 %v80
    %106 = vmatprep.subr.mxu0 %v83
    %107 = vmatpush1.msra.mxu0 %v82
    %108 = vmatprep.subr.mxu0 %v85
    %109 = vmatpush1.msra.mxu0 %v84
    %110 = vmatprep.subr.mxu0 0.0
    %111 = vmatpush1.msra.mxu0 0.0
    %112 = vmatprep.subr.mxu0 0.0
    %113 = vmatpush1.msra.mxu0 0.0
    %114 = vmatprep.subr.mxu0 0.0
    %115 = vmatpush1.msra.mxu0 0.0
    %116 = vmatprep.subr.mxu0 0.0
    %117 = vmatpush1.msra.mxu0 0.0
    %118 = vmatprep.subr.mxu0 0.0
    %119 = vmatpush1.msra.mxu0 0.0
    %120 = vmatprep.subr.mxu0 0.0
    %121 = vmatpush1.msra.mxu0 0.0
    %122 = vmatprep.subr.mxu0 0.0
    %123 = vmatpush1.msra.mxu0 0.0
    %124 = vmatprep.subr.mxu0 0.0
    %125 = vmatpush1.msra.mxu0 0.0
    %126 = vmatprep.subr.mxu0 0.0
    %127 = vmatpush1.msra.mxu0 0.0
    %128 = vmatprep.subr.mxu0 0.0
    %129 = vmatpush1.msra.mxu0 0.0
    %130 = vmatprep.subr.mxu0 0.0
    %131 = vmatpush1.msra.mxu0 0.0
    %132 = vmatprep.subr.mxu0 0.0
    %133 = vmatpush1.msra.mxu0 0.0
    %134 = vmatprep.subr.mxu0 0.0
    %135 = vmatpush1.msra.mxu0 0.0
    %136 = vmatprep.subr.mxu0 0.0
    %137 = vmatpush1.msra.mxu0 0.0
    %138 = vmatprep.subr.mxu0 0.0
    %139 = vmatpush1.msra.mxu0 0.0
    %140 = vmatprep.subr.mxu0 0.0
    %141 = vmatpush1.msra.mxu0 0.0
    %142 = vmatprep.subr.mxu0 0.0
    %143 = vmatpush1.msra.mxu0 0.0
    %144 = vmatprep.subr.mxu0 0.0
    %145 = vmatpush1.msra.mxu0 0.0
    %146 = vmatprep.subr.mxu0 0.0
    %147 = vmatpush1.msra.mxu0 0.0
    %148 = vmatprep.subr.mxu0 0.0
    %149 = vmatpush1.msra.mxu0 0.0
    %150 = vmatprep.subr.mxu0 0.0
    %151 = vmatpush1.msra.mxu0 0.0
    %152 = vmatprep.subr.mxu0 0.0
    %153 = vmatpush1.msra.mxu0 0.0
    %154 = vmatprep.subr.mxu0 0.0
    %155 = vmatpush1.msra.mxu0 0.0
    %156 = vmatprep.subr.mxu0 0.0
    %157 = vmatpush1.msra.mxu0 0.0
    %158 = vmatprep.subr.mxu0 0.0
    %159 = vmatpush1.msra.mxu0 0.0
    %160 = vmatprep.subr.mxu0 0.0
    %161 = vmatpush1.msra.mxu0 0.0
    %162 = vmatprep.subr.mxu0 0.0
    %163 = vmatpush1.msra.mxu0 0.0
    %164 = vmatprep.subr.mxu0 0.0
    %165 = vmatpush1.msra.mxu0 0.0
    %166 = vmatprep.mubr.f32.mxu0 0.0
    %167 = vmatmul.mubr.f32.gmra.mrb[0].mxu0 %v100
    %v168 = vpop.f32.mrb[0].mxu0
    %v169 = vadd.f32 %v91, %v168
    %v170 = vpop.f32.mrb[0].mxu0
    %v171 = vadd.f32 %v95, %v170
    %172 = vdwg.mxu0
    %v173 = vmax.f32 %v169, 0.0
    %v174 = vmax.f32 %v171, 0.0
    %v175 = vld [vmem:[#allocation7] sm:$0xff]
    %v176 = vld [vmem:[#allocation7 + $0x8] sm:$0xff]
    %v177 = vld [vmem:[#allocation7 + $0x10] sm:$0xff]
    %v178 = vld [vmem:[#allocation7 + $0x18] sm:$0xff]
    %v179 = vld [vmem:[#allocation7 + $0x20] sm:$0xff]
    %v180 = vld [vmem:[#allocation7 + $0x28] sm:$0xff]
    %v181 = vld [vmem:[#allocation7 + $0x30] sm:$0xff]
    %v182 = vld [vmem:[#allocation7 + $0x38] sm:$0xff]
    %v183 = vld [vmem:[#allocation7 + $0x40] sm:$0xff]
    %v184 = vld [vmem:[#allocation7 + $0x48] sm:$0xff]
    %v185 = vld [vmem:[#allocation7 + $0x50] sm:$0xff]
    %v186 = vld [vmem:[#allocation7 + $0x58] sm:$0xff]
    %v187 = vld [vmem:[#allocation7 + $0x60] sm:$0xff]
    %v188 = vld [vmem:[#allocation7 + $0x68] sm:$0xff]
    %v189 = vld [vmem:[#allocation7 + $0x70] sm:$0xff]
    %v190 = vld [vmem:[#allocation7 + $0x78] sm:$0xff]
    %v191 = vld [vmem:[#allocation7 + $0x80] sm:$0xff]
    %v192 = vld [vmem:[#allocation7 + $0x88] sm:$0xff]
    %v193 = vld [vmem:[#allocation7 + $0x90] sm:$0xff]
    %v194 = vld [vmem:[#allocation7 + $0x98] sm:$0xff]
    %v195 = vld [vmem:[#allocation7 + $0xa0] sm:$0xff]
    %v196 = vld [vmem:[#allocation7 + $0xa8] sm:$0xff]
    %v197 = vld [vmem:[#allocation7 + $0xb0] sm:$0xff]
    %v198 = vld [vmem:[#allocation7 + $0xb8] sm:$0xff]
    %v199 = vld [vmem:[#allocation7 + $0xc0] sm:$0xff]
    %v200 = vld [vmem:[#allocation7 + $0xc8] sm:$0xff]
    %v201 = vld [vmem:[#allocation7 + $0xd0] sm:$0xff]
    %v202 = vld [vmem:[#allocation7 + $0xd8] sm:$0xff]
    %v203 = vld [vmem:[#allocation7 + $0xe0] sm:$0xff]
    %v204 = vld [vmem:[#allocation7 + $0xe8] sm:$0xff]
    %v205 = vld [vmem:[#allocation7 + $0xf0] sm:$0xff]
    %v206 = vld [vmem:[#allocation7 + $0xf8] sm:$0xff]
    %v207 = vld [vmem:[#allocation7 + $0x100] sm:$0xff]
    %v208 = vld [vmem:[#allocation7 + $0x108] sm:$0xff]
    %v209 = vld [vmem:[#allocation7 + $0x110] sm:$0xff]
    %v210 = vld [vmem:[#allocation7 + $0x118] sm:$0xff]
    %v211 = vld [vmem:[#allocation7 + $0x120] sm:$0xff]
    %v212 = vld [vmem:[#allocation7 + $0x128] sm:$0xff]
    %v213 = vld [vmem:[#allocation7 + $0x130] sm:$0xff]
    %v214 = vld [vmem:[#allocation7 + $0x138] sm:$0xff]
    %v215 = vld [vmem:[#allocation7 + $0x140] sm:$0xff]
    %v216 = vld [vmem:[#allocation7 + $0x148] sm:$0xff]
    %v217 = vld [vmem:[#allocation7 + $0x150] sm:$0xff]
    %v218 = vld [vmem:[#allocation7 + $0x158] sm:$0xff]
    %v219 = vld [vmem:[#allocation7 + $0x160] sm:$0xff]
    %v220 = vld [vmem:[#allocation7 + $0x168] sm:$0xff]
    %v221 = vld [vmem:[#allocation7 + $0x170] sm:$0xff]
    %v222 = vld [vmem:[#allocation7 + $0x178] sm:$0xff]
    %v223 = vld [vmem:[#allocation7 + $0x180] sm:$0xff]
    %v224 = vld [vmem:[#allocation7 + $0x188] sm:$0xff]
    %v225 = vld [vmem:[#allocation7 + $0x190] sm:$0xff]
    %v226 = vld [vmem:[#allocation7 + $0x198] sm:$0xff]
    %v227 = vld [vmem:[#allocation7 + $0x1a0] sm:$0xff]
    %v228 = vld [vmem:[#allocation7 + $0x1a8] sm:$0xff]
    %v229 = vld [vmem:[#allocation7 + $0x1b0] sm:$0xff]
    %v230 = vld [vmem:[#allocation7 + $0x1b8] sm:$0xff]
    %v231 = vld [vmem:[#allocation7 + $0x1c0] sm:$0xff]
    %v232 = vld [vmem:[#allocation7 + $0x1c8] sm:$0xff]
    %v233 = vld [vmem:[#allocation7 + $0x1d0] sm:$0xff]
    %v234 = vld [vmem:[#allocation7 + $0x1d8] sm:$0xff]
    %v235 = vld [vmem:[#allocation7 + $0x1e0] sm:$0xff]
    %v236 = vld [vmem:[#allocation7 + $0x1e8] sm:$0xff]
    %v237 = vld [vmem:[#allocation7 + $0x1f0] sm:$0xff]
    %v238 = vld [vmem:[#allocation7 + $0x1f8] sm:$0xff]
    %s239 = scalar_lea.vmem %s4, 1
    %v240 = vld [vmem:[%s239] ss:$4 sm:$0x3]
    %v242 = vlaneseq
    %v243 = vshrl.u32 %v242, 7
    %v244 = vsub.s32 0, %v243
    %v245 = vrot.slane %v240, %v244
    %v246 = vlaneseq
    %v247 = vshrl.u32 %v246, 7
    %v248 = vsub.s32 1, %v247
    %v249 = vrot.slane %v240, %v248
    %252 = vmatprep.subr.mxu0 %v176
    %253 = vmatpush1.msra.mxu0 %v175
    %254 = vmatprep.subr.mxu0 %v178
    %255 = vmatpush1.msra.mxu0 %v177
    %256 = vmatprep.subr.mxu0 %v180
    %257 = vmatpush1.msra.mxu0 %v179
    %258 = vmatprep.subr.mxu0 %v182
    %259 = vmatpush1.msra.mxu0 %v181
    %260 = vmatprep.subr.mxu0 %v184
    %261 = vmatpush1.msra.mxu0 %v183
    %262 = vmatprep.subr.mxu0 %v186
    %263 = vmatpush1.msra.mxu0 %v185
    %264 = vmatprep.subr.mxu0 %v188
    %265 = vmatpush1.msra.mxu0 %v187
    %266 = vmatprep.subr.mxu0 %v190
    %267 = vmatpush1.msra.mxu0 %v189
    %268 = vmatprep.subr.mxu0 %v192
    %269 = vmatpush1.msra.mxu0 %v191
    %270 = vmatprep.subr.mxu0 %v194
    %271 = vmatpush1.msra.mxu0 %v193
    %272 = vmatprep.subr.mxu0 %v196
    %273 = vmatpush1.msra.mxu0 %v195
    %274 = vmatprep.subr.mxu0 %v198
    %275 = vmatpush1.msra.mxu0 %v197
    %276 = vmatprep.subr.mxu0 %v200
    %277 = vmatpush1.msra.mxu0 %v199
    %278 = vmatprep.subr.mxu0 %v202
    %279 = vmatpush1.msra.mxu0 %v201
    %280 = vmatprep.subr.mxu0 %v204
    %281 = vmatpush1.msra.mxu0 %v203
    %282 = vmatprep.subr.mxu0 %v206
    %283 = vmatpush1.msra.mxu0 %v205
    %284 = vmatprep.subr.mxu0 %v208
    %285 = vmatpush1.msra.mxu0 %v207
    %286 = vmatprep.subr.mxu0 %v210
    %287 = vmatpush1.msra.mxu0 %v209
    %288 = vmatprep.subr.mxu0 %v212
    %289 = vmatpush1.msra.mxu0 %v211
    %290 = vmatprep.subr.mxu0 %v214
    %291 = vmatpush1.msra.mxu0 %v213
    %292 = vmatprep.subr.mxu0 %v216
    %293 = vmatpush1.msra.mxu0 %v215
    %294 = vmatprep.subr.mxu0 %v218
    %295 = vmatpush1.msra.mxu0 %v217
    %296 = vmatprep.subr.mxu0 %v220
    %297 = vmatpush1.msra.mxu0 %v219
    %298 = vmatprep.subr.mxu0 %v222
    %299 = vmatpush1.msra.mxu0 %v221
    %300 = vmatprep.subr.mxu0 %v224
    %301 = vmatpush1.msra.mxu0 %v223
    %302 = vmatprep.subr.mxu0 %v226
    %303 = vmatpush1.msra.mxu0 %v225
    %304 = vmatprep.subr.mxu0 %v228
    %305 = vmatpush1.msra.mxu0 %v227
    %306 = vmatprep.subr.mxu0 %v230
    %307 = vmatpush1.msra.mxu0 %v229
    %308 = vmatprep.subr.mxu0 %v232
    %309 = vmatpush1.msra.mxu0 %v231
    %310 = vmatprep.subr.mxu0 %v234
    %311 = vmatpush1.msra.mxu0 %v233
    %312 = vmatprep.subr.mxu0 %v236
    %313 = vmatpush1.msra.mxu0 %v235
    %314 = vmatprep.subr.mxu0 %v238
    %315 = vmatpush1.msra.mxu0 %v237
    %316 = vmatprep.mubr.f32.mxu0 %v174
    %317 = vmatmul.mubr.f32.gmra.mrb[0].mxu0 %v173
    %v318 = vpop.f32.mrb[0].mxu0
    %v319 = vadd.f32 %v245, %v318
    %v320 = vpop.f32.mrb[0].mxu0
    %v321 = vadd.f32 %v249, %v320
    %322 = vdwg.mxu0
    %v323 = vmax.f32 %v319, 0.0
    %v324 = vmax.f32 %v321, 0.0
    %v325 = vld [vmem:[#allocation8] sm:$0xff]
    %v326 = vld [vmem:[#allocation8 + $0x8] sm:$0xff]
    %v327 = vld [vmem:[#allocation8 + $0x10] sm:$0xff]
    %v328 = vld [vmem:[#allocation8 + $0x18] sm:$0xff]
    %v329 = vld [vmem:[#allocation8 + $0x20] sm:$0xff]
    %v330 = vld [vmem:[#allocation8 + $0x28] sm:$0xff]
    %v331 = vld [vmem:[#allocation8 + $0x30] sm:$0xff]
    %v332 = vld [vmem:[#allocation8 + $0x38] sm:$0xff]
    %v333 = vld [vmem:[#allocation8 + $0x40] sm:$0xff]
    %v334 = vld [vmem:[#allocation8 + $0x48] sm:$0xff]
    %v335 = vld [vmem:[#allocation8 + $0x50] sm:$0xff]
    %v336 = vld [vmem:[#allocation8 + $0x58] sm:$0xff]
    %v337 = vld [vmem:[#allocation8 + $0x60] sm:$0xff]
    %v338 = vld [vmem:[#allocation8 + $0x68] sm:$0xff]
    %v339 = vld [vmem:[#allocation8 + $0x70] sm:$0xff]
    %v340 = vld [vmem:[#allocation8 + $0x78] sm:$0xff]
    %v341 = vld [vmem:[#allocation8 + $0x80] sm:$0xff]
    %v342 = vld [vmem:[#allocation8 + $0x88] sm:$0xff]
    %v343 = vld [vmem:[#allocation8 + $0x90] sm:$0xff]
    %v344 = vld [vmem:[#allocation8 + $0x98] sm:$0xff]
    %v345 = vld [vmem:[#allocation8 + $0xa0] sm:$0xff]
    %v346 = vld [vmem:[#allocation8 + $0xa8] sm:$0xff]
    %v347 = vld [vmem:[#allocation8 + $0xb0] sm:$0xff]
    %v348 = vld [vmem:[#allocation8 + $0xb8] sm:$0xff]
    %v349 = vld [vmem:[#allocation8 + $0xc0] sm:$0xff]
    %v350 = vld [vmem:[#allocation8 + $0xc8] sm:$0xff]
    %v351 = vld [vmem:[#allocation8 + $0xd0] sm:$0xff]
    %v352 = vld [vmem:[#allocation8 + $0xd8] sm:$0xff]
    %v353 = vld [vmem:[#allocation8 + $0xe0] sm:$0xff]
    %v354 = vld [vmem:[#allocation8 + $0xe8] sm:$0xff]
    %v355 = vld [vmem:[#allocation8 + $0xf0] sm:$0xff]
    %v356 = vld [vmem:[#allocation8 + $0xf8] sm:$0xff]
    %v357 = vld [vmem:[#allocation8 + $0x100] sm:$0xff]
    %v358 = vld [vmem:[#allocation8 + $0x108] sm:$0xff]
    %v359 = vld [vmem:[#allocation8 + $0x110] sm:$0xff]
    %v360 = vld [vmem:[#allocation8 + $0x118] sm:$0xff]
    %v361 = vld [vmem:[#allocation8 + $0x120] sm:$0xff]
    %v362 = vld [vmem:[#allocation8 + $0x128] sm:$0xff]
    %v363 = vld [vmem:[#allocation8 + $0x130] sm:$0xff]
    %v364 = vld [vmem:[#allocation8 + $0x138] sm:$0xff]
    %v365 = vld [vmem:[#allocation8 + $0x140] sm:$0xff]
    %v366 = vld [vmem:[#allocation8 + $0x148] sm:$0xff]
    %v367 = vld [vmem:[#allocation8 + $0x150] sm:$0xff]
    %v368 = vld [vmem:[#allocation8 + $0x158] sm:$0xff]
    %v369 = vld [vmem:[#allocation8 + $0x160] sm:$0xff]
    %v370 = vld [vmem:[#allocation8 + $0x168] sm:$0xff]
    %v371 = vld [vmem:[#allocation8 + $0x170] sm:$0xff]
    %v372 = vld [vmem:[#allocation8 + $0x178] sm:$0xff]
    %v373 = vld [vmem:[#allocation8 + $0x180] sm:$0xff]
    %v374 = vld [vmem:[#allocation8 + $0x188] sm:$0xff]
    %v375 = vld [vmem:[#allocation8 + $0x190] sm:$0xff]
    %v376 = vld [vmem:[#allocation8 + $0x198] sm:$0xff]
    %v377 = vld [vmem:[#allocation8 + $0x1a0] sm:$0xff]
    %v378 = vld [vmem:[#allocation8 + $0x1a8] sm:$0xff]
    %v379 = vld [vmem:[#allocation8 + $0x1b0] sm:$0xff]
    %v380 = vld [vmem:[#allocation8 + $0x1b8] sm:$0xff]
    %v381 = vld [vmem:[#allocation8 + $0x1c0] sm:$0xff]
    %v382 = vld [vmem:[#allocation8 + $0x1c8] sm:$0xff]
    %v383 = vld [vmem:[#allocation8 + $0x1d0] sm:$0xff]
    %v384 = vld [vmem:[#allocation8 + $0x1d8] sm:$0xff]
    %v385 = vld [vmem:[#allocation8 + $0x1e0] sm:$0xff]
    %v386 = vld [vmem:[#allocation8 + $0x1e8] sm:$0xff]
    %v387 = vld [vmem:[#allocation8 + $0x1f0] sm:$0xff]
    %v388 = vld [vmem:[#allocation8 + $0x1f8] sm:$0xff]
    %s389 = scalar_lea.vmem %s4, 2
    %v390 = vld [vmem:[%s389] ss:$4 sm:$0x3]
    %v392 = vlaneseq
    %v393 = vshrl.u32 %v392, 7
    %v394 = vsub.s32 0, %v393
    %v395 = vrot.slane %v390, %v394
    %v396 = vlaneseq
    %v397 = vshrl.u32 %v396, 7
    %v398 = vsub.s32 1, %v397
    %v399 = vrot.slane %v390, %v398
    %402 = vmatprep.subr.mxu0 %v326
    %403 = vmatpush1.msra.mxu0 %v325
    %404 = vmatprep.subr.mxu0 %v328
    %405 = vmatpush1.msra.mxu0 %v327
    %406 = vmatprep.subr.mxu0 %v330
    %407 = vmatpush1.msra.mxu0 %v329
    %408 = vmatprep.subr.mxu0 %v332
    %409 = vmatpush1.msra.mxu0 %v331
    %410 = vmatprep.subr.mxu0 %v334
    %411 = vmatpush1.msra.mxu0 %v333
    %412 = vmatprep.subr.mxu0 %v336
    %413 = vmatpush1.msra.mxu0 %v335
    %414 = vmatprep.subr.mxu0 %v338
    %415 = vmatpush1.msra.mxu0 %v337
    %416 = vmatprep.subr.mxu0 %v340
    %417 = vmatpush1.msra.mxu0 %v339
    %418 = vmatprep.subr.mxu0 %v342
    %419 = vmatpush1.msra.mxu0 %v341
    %420 = vmatprep.subr.mxu0 %v344
    %421 = vmatpush1.msra.mxu0 %v343
    %422 = vmatprep.subr.mxu0 %v346
    %423 = vmatpush1.msra.mxu0 %v345
    %424 = vmatprep.subr.mxu0 %v348
    %425 = vmatpush1.msra.mxu0 %v347
    %426 = vmatprep.subr.mxu0 %v350
    %427 = vmatpush1.msra.mxu0 %v349
    %428 = vmatprep.subr.mxu0 %v352
    %429 = vmatpush1.msra.mxu0 %v351
    %430 = vmatprep.subr.mxu0 %v354
    %431 = vmatpush1.msra.mxu0 %v353
    %432 = vmatprep.subr.mxu0 %v356
    %433 = vmatpush1.msra.mxu0 %v355
    %434 = vmatprep.subr.mxu0 %v358
    %435 = vmatpush1.msra.mxu0 %v357
    %436 = vmatprep.subr.mxu0 %v360
    %437 = vmatpush1.msra.mxu0 %v359
    %438 = vmatprep.subr.mxu0 %v362
    %439 = vmatpush1.msra.mxu0 %v361
    %440 = vmatprep.subr.mxu0 %v364
    %441 = vmatpush1.msra.mxu0 %v363
    %442 = vmatprep.subr.mxu0 %v366
    %443 = vmatpush1.msra.mxu0 %v365
    %444 = vmatprep.subr.mxu0 %v368
    %445 = vmatpush1.msra.mxu0 %v367
    %446 = vmatprep.subr.mxu0 %v370
    %447 = vmatpush1.msra.mxu0 %v369
    %448 = vmatprep.subr.mxu0 %v372
    %449 = vmatpush1.msra.mxu0 %v371
    %450 = vmatprep.subr.mxu0 %v374
    %451 = vmatpush1.msra.mxu0 %v373
    %452 = vmatprep.subr.mxu0 %v376
    %453 = vmatpush1.msra.mxu0 %v375
    %454 = vmatprep.subr.mxu0 %v378
    %455 = vmatpush1.msra.mxu0 %v377
    %456 = vmatprep.subr.mxu0 %v380
    %457 = vmatpush1.msra.mxu0 %v379
    %458 = vmatprep.subr.mxu0 %v382
    %459 = vmatpush1.msra.mxu0 %v381
    %460 = vmatprep.subr.mxu0 %v384
    %461 = vmatpush1.msra.mxu0 %v383
    %462 = vmatprep.subr.mxu0 %v386
    %463 = vmatpush1.msra.mxu0 %v385
    %464 = vmatprep.subr.mxu0 %v388
    %465 = vmatpush1.msra.mxu0 %v387
    %466 = vmatprep.mubr.f32.mxu0 %v324
    %467 = vmatmul.mubr.f32.gmra.mrb[0].mxu0 %v323
    %v468 = vpop.f32.mrb[0].mxu0
    %v469 = vadd.f32 %v395, %v468
    %v470 = vpop.f32.mrb[0].mxu0
    %v471 = vadd.f32 %v399, %v470
    %472 = vdwg.mxu0
    %473 = vst [vmem:[#allocation10] sm:$0xff] %v469
    %474 = vst [vmem:[#allocation11] sm:$0xff] %v471
    // Predicated region
    $region38: #{tpu_custom_call.1} parent=1 // pred_check
      _
    $region39: #{tpu_custom_call.1} parent=1 // pred_check_branch
      %476 = sbr.rel (0) target = $region41
    $region40: #{tpu_custom_call.1} parent=1 // pred_region
      %s478 = ssub.s32 128, 128
      %479 = vsyncadd [#allocation4], %s478
      %s481 = sshll.u32 [#allocation10], 4
      %s482 = int_to_ptr.vmem [resolvable:$true] %s481
      %484 = dma.vmem_to_hbm [thread:$0]  %s482, 128, %s5, [#allocation4]
    $region41: #{tpu_custom_call.1} parent=1 // pred_fallthru
      _
    // Predicated region
    $region42: #{tpu_custom_call.1} parent=1 // pred_check
      _
    $region43: #{tpu_custom_call.1} parent=1 // pred_check_branch
      %486 = sbr.rel (0) target = $region45
    $region44: #{tpu_custom_call.1} parent=1 // pred_region
      %s488 = ssub.s32 128, 128
      %489 = vsyncadd [#allocation12], %s488
      %s491 = sshll.u32 [#allocation11], 4
      %s492 = int_to_ptr.vmem [resolvable:$true] %s491
      %494 = dma.vmem_to_hbm [thread:$0]  %s492, 128, %s6, [#allocation12]
    $region45: #{tpu_custom_call.1} parent=1 // pred_fallthru
      _
    // Predicated region
    $region46: #{tpu_custom_call.1} parent=1 // pred_check
      _
    $region47: #{tpu_custom_call.1} parent=1 // pred_check_branch
      %496 = sbr.rel (0) target = $region49
    $region48: #{tpu_custom_call.1} parent=1 // pred_region
      %497 = dma.done [#allocation4], 128
    $region49: #{tpu_custom_call.1} parent=1 // pred_fallthru
      _
    // Predicated region
    $region50: #{tpu_custom_call.1} parent=1 // pred_check
      _
    $region51: #{tpu_custom_call.1} parent=1 // pred_check_branch
      %499 = sbr.rel (0) target = $region53
    $region52: #{tpu_custom_call.1} parent=1 // pred_region
      %500 = dma.done [#allocation12], 128
    $region53: #{tpu_custom_call.1} parent=1 // pred_fallthru
      _
    %501 = vsyncpa [#allocation3], 1
    %502 = vsyncpa [#allocation6], 1
    %503 = vsyncpa [#allocation9], 1
    %504 = vsyncpa [#allocation4], 1
    %505 = vsyncpa [#allocation12], 1

</llo_original>
